<compile_context>
chip_gen: v5e
topology: v5e:2x2
jax: 0.10.0
libtpu: 0.0.40
codegen_flags: <defaults>
</compile_context>

<pallas_src>
import functools

import jax
import jax.numpy as jnp
from jax.experimental import pallas as pl
from jax.experimental.pallas import tpu as pltpu

_LANES = 128
_SUBLANES = 8
_NCORES = 2            # outer "parallel" grid axis (v7x has 2 TensorCores)
_MAX_TILE_ROWS = 4096  # 4096 x 128 f32 = 2 MiB per input per pipeline buffer


def _round_up(x, m):
    return ((x + m - 1) // m) * m


def _focal_loss_kernel(pred_ref, label_ref, out_ref, *, gamma, alpha):
    """One (TILE_M, 128) tile -> accumulate per-(sublane, lane) partial sums."""
    # Zero the resident accumulator block at the start of each core's slice.
    @pl.when(pl.program_id(1) == 0)
    def _():
        out_ref[...] = jnp.zeros_like(out_ref)

    x = pred_ref[...].astype(jnp.float32)
    y = label_ref[...].astype(jnp.float32)

    # Shared transcendental: e = exp(-|x|) feeds both the numerically-stable
    # BCE log term and the sigmoid.
    e = jnp.exp(-jnp.abs(x))                                   # EUP exp
    bce = jnp.maximum(x, 0.0) - x * y + jnp.log1p(e)           # EUP log

    # sigmoid(x) = where(x >= 0, 1, e) / (1 + e).  Approx reciprocal (EUP vrcp)
    # plus one Newton-Raphson step (pure VPU) restores ~f32 accuracy.
    one_p_e = 1.0 + e
    r = pl.reciprocal(one_p_e, approx=True)
    r = r * (2.0 - one_p_e * r)
    p = jnp.where(x >= 0.0, r, e * r)

    p_t = y * p + (1.0 - y) * (1.0 - p)
    u = jnp.maximum(1.0 - p_t, 0.0)        # guard FP rounding (soft labels)

    if gamma == 1.5:                        # default: 1 EUP sqrt, no pow
        mod = u * jnp.sqrt(u)
    elif gamma == 2.0:
        mod = u * u
    elif gamma == 1.0:
        mod = u
    elif gamma == 0.0:
        mod = jnp.ones_like(u)
    else:
        mod = u ** gamma                    # generic: exp(gamma*log(u))

    loss = bce * mod
    if alpha > 0:
        loss = loss * (y * alpha + (1.0 - y) * (1.0 - alpha))

    # Per-lane / per-sublane accumulation: (TILE_M,128) -> (1,8,128). The
    # reshape is tile-aligned for f32 so the sum is cross-vreg VPU adds only
    # (fully hidden under the streaming DMAs).
    tile_m = loss.shape[0]
    out_ref[...] += jnp.sum(
        loss.reshape(1, tile_m // _SUBLANES, _SUBLANES, _LANES), axis=1)


def focal_loss(pred, label, gamma=1.5, alpha=0.25):
    """pred, label: same-shape float arrays (NCHW). Returns the scalar loss."""
    assert pred.shape == label.shape
    c = pred.shape[1]                       # .mean(1) divisor
    numel = pred.size

    # Lane-dense layout: flatten row-major into (M, 128), split rows across the
    # parallel axis, pad with (pred=-100, label=0) which contributes exactly 0.
    m = pl.cdiv(numel, _LANES)
    rows_per_core = _round_up(pl.cdiv(m, _NCORES), _SUBLANES)
    # Choose the inner trip-count first, then an (almost) even, 8-aligned tile
    # size, so the worst-case row padding is ~8 rows per inner step instead of
    # (tile_m - 8) rows per core.
    n_inner = pl.cdiv(rows_per_core, _MAX_TILE_ROWS)
    tile_m = _round_up(pl.cdiv(rows_per_core, n_inner), _SUBLANES)
    rows_per_core = n_inner * tile_m
    m_pad = _NCORES * rows_per_core
    padded = m_pad * _LANES

    pred2d = jnp.pad(jnp.ravel(pred), (0, padded - numel),
                     constant_values=-100.0).reshape(m_pad, _LANES)
    label2d = jnp.pad(jnp.ravel(label), (0, padded - numel),
                      constant_values=0.0).reshape(m_pad, _LANES)

    kernel = functools.partial(_focal_loss_kernel,
                               gamma=float(gamma), alpha=float(alpha))

    in_map = lambda core, i: (core * n_inner + i, 0)

    partials = pl.pallas_call(
        kernel,
        out_shape=jax.ShapeDtypeStruct((_NCORES, _SUBLANES, _LANES), jnp.float32),
        grid_spec=pltpu.PrefetchScalarGridSpec(
            num_scalar_prefetch=0,
            grid=(_NCORES, n_inner),
            in_specs=[
                pl.BlockSpec((tile_m, _LANES), in_map),
                pl.BlockSpec((tile_m, _LANES), in_map),
            ],
            out_specs=pl.BlockSpec((1, _SUBLANES, _LANES),
                                   lambda core, i: (core, 0, 0)),
        ),
        compiler_params=pltpu.CompilerParams(
            dimension_semantics=("parallel", "arbitrary"),
            vmem_limit_bytes=32 * 1024 * 1024,
        ),
        cost_estimate=pl.CostEstimate(
            flops=int(25 * padded),
            transcendentals=int(4 * padded),
            bytes_accessed=int(padded * (pred2d.dtype.itemsize
                                         + label2d.dtype.itemsize)
                               + _NCORES * _SUBLANES * _LANES * 4),
        ),
    )(pred2d, label2d)

    # Tiny final reduce (2*8*128 partials) + the mean(1) divisor.
    return jnp.sum(partials) / jnp.float32(c)


def _focal_loss_ref(pred, label, gamma=1.5, alpha=0.25):
    """Pure-JAX reference matching the PyTorch module."""
    x = pred.astype(jnp.float32)
    y = label.astype(jnp.float32)
    bce = jnp.maximum(x, 0.0) - x * y + jnp.log1p(jnp.exp(-jnp.abs(x)))
    p = jax.nn.sigmoid(x)
    p_t = y * p + (1.0 - y) * (1.0 - p)
    loss = bce * (1.0 - p_t) ** gamma
    if alpha > 0:
        loss = loss * (y * alpha + (1.0 - y) * (1.0 - alpha))
    return loss.mean(axis=1).sum()


if __name__ == "__main__":
    key = jax.random.PRNGKey(0)
    k_pred, k_label = jax.random.split(key)

    # NCHW inputs, matching typical detector-head logits/targets.
    shape = (2, 4, 16, 16)
    pred = jax.random.normal(k_pred, shape, dtype=jnp.float32)
    label = (jax.random.uniform(k_label, shape) > 0.5).astype(jnp.float32)

    out = focal_loss(pred, label, gamma=1.5, alpha=0.25)
    out = jax.block_until_ready(out)

    ref = _focal_loss_ref(pred, label, gamma=1.5, alpha=0.25)
    assert jnp.allclose(out, ref, rtol=1e-4, atol=1e-5), (out, ref)

    print("KERNEL_OK")
</pallas_src>

<mosaic_0001>
module attributes {stable_mosaic.version = 11 : i64} {
  func.func @_focal_loss_kernel(%arg0: i32, %arg1: i32, %arg2: memref<8x128xf32, #tpu.memory_space<vmem>>, %arg3: memref<8x128xf32, #tpu.memory_space<vmem>>, %arg4: memref<1x8x128xf32, #tpu.memory_space<vmem>>) attributes {dimension_semantics = [#tpu.dimension_semantics<parallel>, #tpu.dimension_semantics<arbitrary>], iteration_bounds = array<i64: 2, 1>, scalar_prefetch = 0 : i64, scratch_operands = 0 : i64, tpu.core_type = #tpu.core_type<tc>, window_params = [{transform_indices = @transform_0, window_bounds = array<i64: 8, 128>}, {transform_indices = @transform_1, window_bounds = array<i64: 8, 128>}, {transform_indices = @transform_2, window_bounds = array<i64: 1, 8, 128>}]} {
    %c0_i32 = arith.constant 0 : i32
    %0 = arith.cmpi eq, %arg1, %c0_i32 : i32
    %1 = arith.extui %0 : i1 to i32
    %c0_i32_0 = arith.constant 0 : i32
    %2 = arith.cmpi ne, %1, %c0_i32_0 : i32
    scf.if %2 {
      %cst_22 = arith.constant 0.000000e+00 : f32
      %53 = vector.broadcast %cst_22 : f32 to vector<1x8x128xf32>
      %c0_23 = arith.constant 0 : index
      %c0_24 = arith.constant 0 : index
      %c0_25 = arith.constant 0 : index
      %54 = vector.load %arg4[%c0_23, %c0_24, %c0_25] : memref<1x8x128xf32, #tpu.memory_space<vmem>>, vector<1x8x128xf32>
      tpu.vector_store %arg4[%c0_23, %c0_24, %c0_25], %53 {strides = array<i32>} : memref<1x8x128xf32, #tpu.memory_space<vmem>>, vector<1x8x128xf32>,
    } else {
    }
    %c0 = arith.constant 0 : index
    %c0_1 = arith.constant 0 : index
    %3 = vector.load %arg2[%c0, %c0_1] : memref<8x128xf32, #tpu.memory_space<vmem>>, vector<8x128xf32>
    %c0_2 = arith.constant 0 : index
    %c0_3 = arith.constant 0 : index
    %4 = vector.load %arg3[%c0_2, %c0_3] : memref<8x128xf32, #tpu.memory_space<vmem>>, vector<8x128xf32>
    %5 = math.absf %3 : vector<8x128xf32>
    %cst = arith.constant 0.000000e+00 : f32
    %6 = vector.broadcast %cst : f32 to vector<8x128xf32>
    %7 = arith.subf %6, %5 : vector<8x128xf32>
    %8 = math.exp %7 : vector<8x128xf32>
    %cst_4 = arith.constant 0.000000e+00 : f32
    %9 = vector.broadcast %cst_4 : f32 to vector<8x128xf32>
    %10 = arith.maximumf %3, %9 : vector<8x128xf32>
    %11 = arith.mulf %3, %4 : vector<8x128xf32>
    %12 = arith.subf %10, %11 : vector<8x128xf32>
    %13 = math.log1p %8 : vector<8x128xf32>
    %14 = arith.addf %12, %13 : vector<8x128xf32>
    %cst_5 = arith.constant 1.000000e+00 : f32
    %15 = vector.broadcast %cst_5 : f32 to vector<8x128xf32>
    %16 = arith.addf %15, %8 : vector<8x128xf32>
    %17 = tpu.reciprocal %16 {approx = true} : vector<8x128xf32> -> vector<8x128xf32>
    %18 = arith.mulf %16, %17 : vector<8x128xf32>
    %cst_6 = arith.constant 2.000000e+00 : f32
    %19 = vector.broadcast %cst_6 : f32 to vector<8x128xf32>
    %20 = arith.subf %19, %18 : vector<8x128xf32>
    %21 = arith.mulf %17, %20 : vector<8x128xf32>
    %cst_7 = arith.constant 0.000000e+00 : f32
    %22 = vector.broadcast %cst_7 : f32 to vector<8x128xf32>
    %23 = arith.cmpf oge, %3, %22 : vector<8x128xf32>
    %24 = arith.mulf %8, %21 : vector<8x128xf32>
    %25 = arith.select %23, %21, %24 : vector<8x128xi1>, vector<8x128xf32>
    %26 = arith.mulf %4, %25 : vector<8x128xf32>
    %cst_8 = arith.constant 1.000000e+00 : f32
    %27 = vector.broadcast %cst_8 : f32 to vector<8x128xf32>
    %28 = arith.subf %27, %4 : vector<8x128xf32>
    %cst_9 = arith.constant 1.000000e+00 : f32
    %29 = vector.broadcast %cst_9 : f32 to vector<8x128xf32>
    %30 = arith.subf %29, %25 : vector<8x128xf32>
    %31 = arith.mulf %28, %30 : vector<8x128xf32>
    %32 = arith.addf %26, %31 : vector<8x128xf32>
    %cst_10 = arith.constant 1.000000e+00 : f32
    %33 = vector.broadcast %cst_10 : f32 to vector<8x128xf32>
    %34 = arith.subf %33, %32 : vector<8x128xf32>
    %cst_11 = arith.constant 0.000000e+00 : f32
    %35 = vector.broadcast %cst_11 : f32 to vector<8x128xf32>
    %36 = arith.maximumf %34, %35 : vector<8x128xf32>
    %37 = math.sqrt %36 : vector<8x128xf32>
    %38 = arith.mulf %36, %37 : vector<8x128xf32>
    %39 = arith.mulf %14, %38 : vector<8x128xf32>
    %cst_12 = arith.constant 2.500000e-01 : f32
    %40 = vector.broadcast %cst_12 : f32 to vector<8x128xf32>
    %41 = arith.mulf %4, %40 : vector<8x128xf32>
    %cst_13 = arith.constant 1.000000e+00 : f32
    %42 = vector.broadcast %cst_13 : f32 to vector<8x128xf32>
    %43 = arith.subf %42, %4 : vector<8x128xf32>
    %cst_14 = arith.constant 7.500000e-01 : f32
    %44 = vector.broadcast %cst_14 : f32 to vector<8x128xf32>
    %45 = arith.mulf %43, %44 : vector<8x128xf32>
    %46 = arith.addf %41, %45 : vector<8x128xf32>
    %47 = arith.mulf %39, %46 : vector<8x128xf32>
    %c0_15 = arith.constant 0 : index
    %c0_16 = arith.constant 0 : index
    %c0_17 = arith.constant 0 : index
    %48 = vector.load %arg4[%c0_15, %c0_16, %c0_17] : memref<1x8x128xf32, #tpu.memory_space<vmem>>, vector<1x8x128xf32>
    %49 = vector.shape_cast %47 : vector<8x128xf32> to vector<1x1x8x128xf32>
    %cst_18 = arith.constant dense<0.000000e+00> : vector<1x8x128xf32>
    %50 = vector.multi_reduction <add>, %49, %cst_18 [1] : vector<1x1x8x128xf32> to vector<1x8x128xf32>
    %51 = arith.addf %48, %50 : vector<1x8x128xf32>
    %c0_19 = arith.constant 0 : index
    %c0_20 = arith.constant 0 : index
    %c0_21 = arith.constant 0 : index
    %52 = vector.load %arg4[%c0_19, %c0_20, %c0_21] : memref<1x8x128xf32, #tpu.memory_space<vmem>>, vector<1x8x128xf32>
    tpu.vector_store %arg4[%c0_19, %c0_20, %c0_21], %51 {strides = array<i32>} : memref<1x8x128xf32, #tpu.memory_space<vmem>>, vector<1x8x128xf32>,
    return
  }
  func.func @transform_0(%arg0: i32, %arg1: i32) -> (i32, i32) {
    %c1_i32 = arith.constant 1 : i32
    %0 = arith.muli %arg0, %c1_i32 : i32
    %1 = arith.addi %0, %arg1 : i32
    %c0_i32 = arith.constant 0 : i32
    %c0_i32_0 = arith.constant 0 : i32
    return %1, %c0_i32 : i32, i32
  }
  func.func @transform_1(%arg0: i32, %arg1: i32) -> (i32, i32) {
    %c1_i32 = arith.constant 1 : i32
    %0 = arith.muli %arg0, %c1_i32 : i32
    %1 = arith.addi %0, %arg1 : i32
    %c0_i32 = arith.constant 0 : i32
    %c0_i32_0 = arith.constant 0 : i32
    return %1, %c0_i32 : i32, i32
  }
  func.func @transform_2(%arg0: i32, %arg1: i32) -> (i32, i32, i32) {
    %c0_i32 = arith.constant 0 : i32
    %c0_i32_0 = arith.constant 0 : i32
    %c0_i32_1 = arith.constant 0 : i32
    return %arg0, %c0_i32, %c0_i32_0 : i32, i32, i32
  }
}

</mosaic_0001>

<llo_original>
// kernel: tpu_custom_call.1
$region0: #{tpu_custom_call.1}
  #allocation0 [shape = 'u32[]', space=smem, size = 0x4, offset = 0x4, fixed_abs, tag = 'smem constant byte address 0x4 - core index']
  #allocation1 [shape = 'u32[72,128]{1,0:T(1,128)}', space=vmem, size = 0x9000, scoped, tag = 'internal scratch']
  %s0 = inlined_call_operand.hbm [shape: f32[16,128], index: 0, kind: input, shape index: {}]
  %s1 = inlined_call_operand.hbm [shape: f32[16,128], index: 1, kind: input, shape index: {}]
  %s2 = inlined_call_operand.hbm [shape: f32[2,8,128], index: 2, kind: output, shape index: {}]
  %s3 = sld [smem:[#allocation0]]
  $region53: #{tpu_custom_call.1} parent=0
    _
  %s5 = ssub.s32 1, %s3
  %s6 = scalar_select 0, %s5, %s3
  $region1: #{tpu_custom_call.1} parent=0
    #allocation2 [shape = 'u8[8192]{0}', space=vmem, size = 0x2000, scoped, tag = 'input window, operand 0']
    #allocation3 [shape = 's32[2]{0}', space=sflag, size = 0x8, scoped, tag = 'scoped memory for tpu_custom_call.1']
    #allocation4 [shape = 's32[2]{0}', space=sflag, size = 0x8, scoped, tag = 'scoped memory for tpu_custom_call.1']
    #allocation5 [shape = 'u8[8192]{0}', space=vmem, size = 0x2000, scoped, tag = 'input window, operand 1']
    #allocation6 [shape = 's32[2]{0}', space=sflag, size = 0x8, scoped, tag = 'scoped memory for tpu_custom_call.1']
    #allocation7 [shape = 'u8[8192]{0}', space=vmem, size = 0x2000, scoped, tag = 'output window, operand 0']
    %7 = vsyncpa [#allocation3], 0
    %s8 = scalar_lea.sflag [#allocation3], 1
    %9 = vsyncpa %s8, 0
    %10 = vsyncpa [#allocation6], 0
    %s11 = scalar_lea.sflag [#allocation6], 1
    %12 = vsyncpa %s11, 0
    %13 = vsyncpa [#allocation4], 0
    %s14 = scalar_lea.sflag [#allocation4], 1
    %15 = vsyncpa %s14, 0
    loop: start=0, step=1, limit=4
    $region2: #{tpu_custom_call.1} parent=1 // loop_pre_header
      _
    $region3: #{tpu_custom_call.1} parent=1 // loop_header
      %s17 = sphi 0, %s21
      %p18 = scmp.ge.s32.totalorder %s17, 4
      %s24 = sphi 0, %s36
      %s25 = sphi 0, %s32
      %s26 = sphi 0, %s24
      %s27 = sphi 0, %s25
      %s28 = sphi 0, %s26
      %s29 = sphi 0, %s27
      %s41 = sphi 0, %s43
      %s44 = sphi 0, %s41
      %s45 = sphi 0, %s44
      %s61 = sphi 0, %s45
      %s69 = sphi 0, %s71
      %s72 = sphi 0, %s69
      %s73 = sphi 0, %s72
      %s89 = sphi 0, %s73
      %s95 = sphi 0, %s97
      %s98 = sphi 0, %s95
      %s99 = sphi 0, %s98
      %s115 = sphi 0, %s99
    $region4: #{tpu_custom_call.1} parent=1 // loop_header_branch
      %20 = sbr.rel (%p18) target = $region8
    $region5: #{tpu_custom_call.1} parent=1 // loop_body
      %s22 = ssub.s32 %s17, 1
      %s23 = ssub.s32 %s17, 2
      %s30 = sadd.s32 1, %s25
      %p31 = scmp.ge.s32.totalorder %s30, 1
      %s32 = scalar_select %p31, 0, %s30
      %s33 = sadd.s32 1, %s24
      %s34 = scalar_select %p31, %s33, %s24
      %p35 = scmp.ge.s32.totalorder %s34, 2
      %s36 = scalar_select %p35, 0, %s34
      %s37 = sadd.s32 %s24, %s25
      %s38 = sadd.s32 %s36, %s32
      %s39 = ssub.s32 %s37, %s38
      %p40 = scmp.eq.s32.totalorder %s39, 0
      %s42 = sadd.s32 %s41, 1
      %s43 = scalar_select %p40, %s41, %s42
      %p46 = pneg %p40
      %p47 = scmp.eq.s32.totalorder %s17, 1
      %p48 = por %p46, %p47
      %p49 = scmp.ne.s32.totalorder %s41, %s44
      %p50 = scmp.eq.s32.totalorder %s17, 0
      %p51 = por %p49, %p50
      %p52 = scmp.ne.s32.totalorder %s41, %s44
      %p53 = scmp.eq.s32.totalorder %s22, 1
      %p54 = por %p52, %p53
      %p55 = scmp.ne.s32.totalorder %s44, %s45
      %p56 = scmp.eq.s32.totalorder %s22, 0
      %p57 = por %p55, %p56
      %p58 = scmp.ne.s32.totalorder %s44, %s45
      %p59 = scmp.eq.s32.totalorder %s23, 1
      %p60 = por %p58, %p59
      %p62 = scmp.ne.s32.totalorder %s45, %s61
      %p63 = scmp.eq.s32.totalorder %s23, 0
      %p64 = por %p62, %p63
      %s65 = sadd.s32 %s24, %s25
      %s66 = sadd.s32 %s36, %s32
      %s67 = ssub.s32 %s65, %s66
      %p68 = scmp.eq.s32.totalorder %s67, 0
      %s70 = sadd.s32 %s69, 1
      %s71 = scalar_select %p68, %s69, %s70
      %p74 = pneg %p68
      %p75 = scmp.eq.s32.totalorder %s17, 1
      %p76 = por %p74, %p75
      %p77 = scmp.ne.s32.totalorder %s69, %s72
      %p78 = scmp.eq.s32.totalorder %s17, 0
      %p79 = por %p77, %p78
      %p80 = scmp.ne.s32.totalorder %s69, %s72
      %p81 = scmp.eq.s32.totalorder %s22, 1
      %p82 = por %p80, %p81
      %p83 = scmp.ne.s32.totalorder %s72, %s73
      %p84 = scmp.eq.s32.totalorder %s22, 0
      %p85 = por %p83, %p84
      %p86 = scmp.ne.s32.totalorder %s72, %s73
      %p87 = scmp.eq.s32.totalorder %s23, 1
      %p88 = por %p86, %p87
      %p90 = scmp.ne.s32.totalorder %s73, %s89
      %p91 = scmp.eq.s32.totalorder %s23, 0
      %p92 = por %p90, %p91
      %s93 = ssub.s32 %s24, %s36
      %p94 = scmp.eq.s32.totalorder %s93, 0
      %s96 = sadd.s32 %s95, 1
      %s97 = scalar_select %p94, %s95, %s96
      %p100 = pneg %p94
      %p101 = scmp.eq.s32.totalorder %s17, 1
      %p102 = por %p100, %p101
      %p103 = scmp.ne.s32.totalorder %s95, %s98
      %p104 = scmp.eq.s32.totalorder %s17, 0
      %p105 = por %p103, %p104
      %p106 = scmp.ne.s32.totalorder %s95, %s98
      %p107 = scmp.eq.s32.totalorder %s22, 1
      %p108 = por %p106, %p107
      %p109 = scmp.ne.s32.totalorder %s98, %s99
      %p110 = scmp.eq.s32.totalorder %s22, 0
      %p111 = por %p109, %p110
      %p112 = scmp.ne.s32.totalorder %s98, %s99
      %p113 = scmp.eq.s32.totalorder %s23, 1
      %p114 = por %p112, %p113
      %p116 = scmp.ne.s32.totalorder %s99, %s115
      %p117 = scmp.eq.s32.totalorder %s23, 0
      %p118 = por %p116, %p117
      %p119 = scmp.le.s32.totalorder 1, %s17
      %p120 = scmp.lt.s32.totalorder %s17, 3
      %p121 = pnand %p119, %p120
      %p122 = pneg %p121
      // Predicated region
      $region9: #{tpu_custom_call.1} parent=5 // pred_check
        _
      $region10: #{tpu_custom_call.1} parent=5 // pred_check_branch
        %124 = sbr.rel (%p121) target = $region12
      $region11: #{tpu_custom_call.1} parent=5 // pred_region
        %s125 = ssub.s32 %s17, 1
      $region12: #{tpu_custom_call.1} parent=5 // pred_fallthru
        _
      %p126 = scmp.lt.s32.totalorder %s17, 2
      // Predicated region
      $region13: #{tpu_custom_call.1} parent=5 // pred_check
        %p127 = pneg %p126
      $region14: #{tpu_custom_call.1} parent=5 // pred_check_branch
        %129 = sbr.rel (%p127) target = $region16
      $region15: #{tpu_custom_call.1} parent=5 // pred_region
        // Predicated region
        $region17: #{tpu_custom_call.1} parent=15 // pred_check
          %p130 = pneg %p51
        $region18: #{tpu_custom_call.1} parent=15 // pred_check_branch
          %132 = sbr.rel (%p130) target = $region20
        $region19: #{tpu_custom_call.1} parent=15 // pred_region
          %s133 = sand.u32 %s41, 1
          %s134 = scalar_lea.sflag [#allocation3], %s133
          %s135 = sand.u32 %s41, 1
          %s136 = smul.addr %s135, 8
          %s137 = scalar_lea.vmem [#allocation2], %s136
          %s138 = sadd.s32 %s24, %s25
          %140 = vsyncadd %s134, 0
          %s141 = smul.addr %s138, 8
          %s142 = scalar_lea.hbm %s0, %s141
          %s144 = sshll.u32 %s142, 4
          %s145 = int_to_ptr.hbm [resolvable:$true] %s144
          %s146 = sshll.u32 %s137, 4
          %s147 = int_to_ptr.vmem [resolvable:$true] %s146
          %149 = dma.hbm_to_vmem [thread:$0]  %s145, 128, %s147, %s134
        $region20: #{tpu_custom_call.1} parent=15 // pred_fallthru
          _
        // Predicated region
        $region21: #{tpu_custom_call.1} parent=15 // pred_check
          %p150 = pneg %p79
        $region22: #{tpu_custom_call.1} parent=15 // pred_check_branch
          %152 = sbr.rel (%p150) target = $region24
        $region23: #{tpu_custom_call.1} parent=15 // pred_region
          %s153 = sand.u32 %s69, 1
          %s154 = scalar_lea.sflag [#allocation6], %s153
          %s155 = sand.u32 %s69, 1
          %s156 = smul.addr %s155, 8
          %s157 = scalar_lea.vmem [#allocation5], %s156
          %s158 = sadd.s32 %s24, %s25
          %160 = vsyncadd %s154, 0
          %s161 = smul.addr %s158, 8
          %s162 = scalar_lea.hbm %s1, %s161
          %s164 = sshll.u32 %s162, 4
          %s165 = int_to_ptr.hbm [resolvable:$true] %s164
          %s166 = sshll.u32 %s157, 4
          %s167 = int_to_ptr.vmem [resolvable:$true] %s166
          %169 = dma.hbm_to_vmem [thread:$0]  %s165, 128, %s167, %s154
        $region24: #{tpu_custom_call.1} parent=15 // pred_fallthru
          _
      $region16: #{tpu_custom_call.1} parent=5 // pred_fallthru
        _
      %p170 = scmp.le.s32.totalorder 1, %s17
      %p171 = scmp.lt.s32.totalorder %s17, 3
      %p172 = pnand %p170, %p171
      %p173 = pneg %p172
      // Predicated region
      $region25: #{tpu_custom_call.1} parent=5 // pred_check
        _
      $region26: #{tpu_custom_call.1} parent=5 // pred_check_branch
        %175 = sbr.rel (%p172) target = $region28
      $region27: #{tpu_custom_call.1} parent=5 // pred_region
        %s176 = ssub.s32 %s17, 1
        %s177 = sand.u32 %s44, 1
        %s178 = scalar_lea.sflag [#allocation3], %s177
        %s179 = sand.u32 %s44, 1
        %s180 = smul.addr %s179, 8
        %s181 = scalar_lea.vmem [#allocation2], %s180
        // Predicated region
        $region29: #{tpu_custom_call.1} parent=27 // pred_check
          %p182 = pneg %p57
        $region30: #{tpu_custom_call.1} parent=27 // pred_check_branch
          %184 = sbr.rel (%p182) target = $region32
        $region31: #{tpu_custom_call.1} parent=27 // pred_region
          %186 = dma.done %s178, 128
        $region32: #{tpu_custom_call.1} parent=27 // pred_fallthru
          _
        %s187 = sand.u32 %s72, 1
        %s188 = scalar_lea.sflag [#allocation6], %s187
        %s189 = sand.u32 %s72, 1
        %s190 = smul.addr %s189, 8
        %s191 = scalar_lea.vmem [#allocation5], %s190
        // Predicated region
        $region33: #{tpu_custom_call.1} parent=27 // pred_check
          %p192 = pneg %p85
        $region34: #{tpu_custom_call.1} parent=27 // pred_check_branch
          %194 = sbr.rel (%p192) target = $region36
        $region35: #{tpu_custom_call.1} parent=27 // pred_region
          %196 = dma.done %s188, 128
        $region36: #{tpu_custom_call.1} parent=27 // pred_fallthru
          _
        %s197 = sand.u32 %s44, 1
        %s198 = scalar_lea.sflag [#allocation3], %s197
        %s199 = sand.u32 %s44, 1
        %s200 = smul.addr %s199, 8
        %s201 = scalar_lea.vmem [#allocation2], %s200
        %p202 = pneg %p57
        %p203 = pneg %p54
        %s204 = sand.u32 %s72, 1
        %s205 = scalar_lea.sflag [#allocation6], %s204
        %s206 = sand.u32 %s72, 1
        %s207 = smul.addr %s206, 8
        %s208 = scalar_lea.vmem [#allocation5], %s207
        %p209 = pneg %p85
        %p210 = pneg %p82
        %p211 = pneg %p111
        %p212 = pneg %p108
        %s213 = sand.u32 %s98, 1
        %s214 = scalar_lea.sflag [#allocation4], %s213
        %s215 = sand.u32 %s98, 1
        %s216 = smul.addr %s215, 8
        %s217 = scalar_lea.vmem [#allocation7], %s216
        %s218 = sadd.s32 %s26, %s27
        %s219 = sadd.s32 %s26, %s27
        %p220 = scmp.eq.s32.totalorder %s27, 0
        // Predicated region
        $region37: #{tpu_custom_call.1} parent=27 // pred_check
          %p221 = pneg %p220
        $region38: #{tpu_custom_call.1} parent=27 // pred_check_branch
          %223 = sbr.rel (%p221) target = $region40
        $region39: #{tpu_custom_call.1} parent=27 // pred_region
          %224 = vst [vmem:[%s217] sm:$0xff] 0.0
        $region40: #{tpu_custom_call.1} parent=27 // pred_fallthru
          _
        %v225 = vld [vmem:[%s181] sm:$0xff]
        %v226 = vld [vmem:[%s191] sm:$0xff]
        %v227 = vand.u32 2147483647, %v225
        %v228 = vsub.f32 0.0, %v227
        %v229 = vmul.f32 %v228, 1.442695
        %v230 = vpow.pop %v229
        %v231 = vmax.f32 %v225, 0.0
        %v232 = vmul.f32 %v225, %v226
        %v233 = vsub.f32 %v231, %v232
        %v234 = vadd.f32 %v230, 1.0
        %v235 = vlog2.pop %v234
        %v236 = vmul.f32 %v235, 0.6931472
        %v237 = vmul.f32 -0.5, %v230
        %v238 = vadd.f32 %v237, 1.0
        %v239 = vmul.f32 %v238, %v230
        %v240 = vand.u32 2147483647, %v230
        %vm241 = vcmp.lt.f32.partialorder %v240, 0.0004427343
        %v242 = vsel %vm241, %v239, %v236
        %v243 = vadd.f32 %v233, %v242
        %v244 = vadd.f32 %v230, 1.0
        %v245 = vrcp.pop %v244
        %v246 = vmul.f32 %v244, %v245
        %v247 = vsub.f32 2.0, %v246
        %v248 = vmul.f32 %v245, %v247
        %vm249 = vcmp.ge.f32.partialorder %v225, 0.0
        %v250 = vmul.f32 %v230, %v248
        %v251 = vsel %vm249, %v248, %v250
        %v252 = vmul.f32 %v226, %v251
        %v253 = vsub.f32 1.0, %v226
        %v254 = vsub.f32 1.0, %v251
        %v255 = vmul.f32 %v253, %v254
        %v256 = vadd.f32 %v252, %v255
        %v257 = vsub.f32 1.0, %v256
        %v258 = vmax.f32 %v257, 0.0
        %v259 = vrsqrt.pop %v258
        %v260 = vmul.f32 %v259, %v258
        %v261 = vmul.f32 %v260, %v259
        %v262 = vmul.f32 0.5, %v261
        %v263 = vsub.f32 1.5, %v262
        %v264 = vmul.f32 %v259, %v263
        %v265 = vmul.f32 %v258, %v264
        %vm266 = vcmp.eq.f32.partialorder %v258, inf
        %v267 = vsel %vm266, %v258, %v265
        %vm268 = vcmp.eq.f32.partialorder %v258, 0.0
        %v269 = vand.u32 %v258, 2147483648
        %v270 = vsel %vm268, %v269, %v267
        %v271 = vmul.f32 %v258, %v270
        %v272 = vmul.f32 %v243, %v271
        %v273 = vmul.f32 %v226, 0.25
        %v274 = vmul.f32 %v253, 0.75
        %v275 = vadd.f32 %v273, %v274
        %v276 = vmul.f32 %v272, %v275
        %v277 = vld [vmem:[%s217] sm:$0xff]
        %v278 = vadd.f32 %v276, 0.0
        %v279 = vadd.f32 %v277, %v278
        %280 = vst [vmem:[%s217] sm:$0xff] %v279
        %s281 = sand.u32 %s98, 1
        %s282 = scalar_lea.sflag [#allocation4], %s281
        %s283 = sand.u32 %s98, 1
        %s284 = smul.addr %s283, 8
        %s285 = scalar_lea.vmem [#allocation7], %s284
        // Predicated region
        $region41: #{tpu_custom_call.1} parent=27 // pred_check
          %p286 = pneg %p108
        $region42: #{tpu_custom_call.1} parent=27 // pred_check_branch
          %288 = sbr.rel (%p286) target = $region44
        $region43: #{tpu_custom_call.1} parent=27 // pred_region
          %290 = vsyncadd %s282, 0
          %s291 = smul.addr %s26, 8
          %s292 = scalar_lea.hbm %s2, %s291
          %s294 = sshll.u32 %s285, 4
          %s295 = int_to_ptr.vmem [resolvable:$true] %s294
          %s296 = sshll.u32 %s292, 4
          %s297 = int_to_ptr.hbm [resolvable:$true] %s296
          %299 = dma.vmem_to_hbm [thread:$0]  %s295, 128, %s297, %s282
        $region44: #{tpu_custom_call.1} parent=27 // pred_fallthru
          _
      $region28: #{tpu_custom_call.1} parent=5 // pred_fallthru
        _
      %p300 = scmp.le.s32.totalorder 2, %s17
      // Predicated region
      $region45: #{tpu_custom_call.1} parent=5 // pred_check
        %p301 = pneg %p300
      $region46: #{tpu_custom_call.1} parent=5 // pred_check_branch
        %303 = sbr.rel (%p301) target = $region48
      $region47: #{tpu_custom_call.1} parent=5 // pred_region
        %s304 = ssub.s32 %s17, 2
        // Predicated region
        $region49: #{tpu_custom_call.1} parent=47 // pred_check
          %p305 = pneg %p114
        $region50: #{tpu_custom_call.1} parent=47 // pred_check_branch
          %307 = sbr.rel (%p305) target = $region52
        $region51: #{tpu_custom_call.1} parent=47 // pred_region
          %s308 = sand.u32 %s99, 1
          %s309 = scalar_lea.sflag [#allocation4], %s308
          %s310 = sand.u32 %s99, 1
          %s311 = smul.addr %s310, 8
          %s312 = scalar_lea.vmem [#allocation7], %s311
          %314 = dma.done %s309, 128
        $region52: #{tpu_custom_call.1} parent=47 // pred_fallthru
          _
      $region48: #{tpu_custom_call.1} parent=5 // pred_fallthru
        _
    $region6: #{tpu_custom_call.1} parent=1 // loop_footer
      %s21 = sadd.s32 1, %s17
    $region7: #{tpu_custom_call.1} parent=1 // loop_footer_branch
      %16 = sbr.rel target = $region3
    $region8: #{tpu_custom_call.1} parent=1 // loop_exit
      _
    %315 = vsyncpa [#allocation3], 1
    %s316 = scalar_lea.sflag [#allocation3], 1
    %317 = vsyncpa %s316, 1
    %318 = vsyncpa [#allocation6], 1
    %s319 = scalar_lea.sflag [#allocation6], 1
    %320 = vsyncpa %s319, 1
    %321 = vsyncpa [#allocation4], 1
    %s322 = scalar_lea.sflag [#allocation4], 1
    %323 = vsyncpa %s322, 1

</llo_original>
